<compile_context>
chip_gen: v7x
topology: tpu7x:2x2x1
jax: 0.10.0
libtpu: 0.0.40
codegen_flags: <defaults>
</compile_context>

<pallas_src>
import jax
import jax.numpy as jnp
from jax.experimental import pallas as pl
from jax.experimental.pallas import tpu as pltpu


# ----------------------------------------------------------------------------- utils
def _round_up(n, m):
    return (n + m - 1) // m * m


def choose_tiling(num_blocks_hint, max_pts_per_block, target_tile_rows=1024):
    """Static tiling. Tiles of 512-2048 rows reach >=85% of HBM roofline; per-step
    VMEM (double-buffered input tile + small intermediates) stays far below the
    32 MiB scoped-VMEM budget we request (safe on v7x's 64 MiB part)."""
    pts_per_block = max(8, _round_up(max_pts_per_block, 8))
    blocks_per_tile = max(8, (target_tile_rows // pts_per_block) // 8 * 8)
    max_blocks = _round_up(max(num_blocks_hint, 1), blocks_per_tile)
    return max_blocks, pts_per_block, blocks_per_tile


# ----------------------------------------------------------------------------- kernel
def _pointnet_block_kernel(pts_ref,
                           w1_ref, b1_ref, w2_ref, b2_ref,
                           fw1_ref, fb1_ref, fw2_ref, fb2_ref,
                           out_ref):
    tb, f2 = out_ref.shape                 # blocks in this tile, fc output width
    rows = pts_ref.shape[0]                # tb * pts_per_block
    p = rows // tb

    pts = pts_ref[...]                     # (rows, 4) = [x, y, z, mask]

    # ---- pointwise MLP layer 1 (K=3): three VPU FMAs, skip the MXU entirely ----
    w1 = w1_ref[...]                       # (3, H1)
    h = (pts[:, 0:1] * w1[0:1, :]
         + pts[:, 1:2] * w1[1:2, :]
         + pts[:, 2:3] * w1[2:3, :]
         + b1_ref[...])
    h = jnp.maximum(h, 0.0)

    # ---- pointwise MLP layer 2 (H1 x H2) on the MXU (mlp_dolastrelu = False) ----
    feat = jnp.dot(h, w2_ref[...], preferred_element_type=jnp.float32) + b2_ref[...]

    # ---- single-pass segmented max over each block's contiguous P rows ----
    neg = jnp.float32(-3.0e38)
    feat = jnp.where(pts[:, 3:4] > 0.0, feat, neg)                 # mask pad rows
    cw = jnp.max(feat.reshape(tb, p, feat.shape[-1]), axis=1)      # (tb, H2)
    cw = jnp.where(cw <= neg * 0.5, 0.0, cw)                       # empty (padded) blocks -> 0

    # ---- fc MLP on the per-block codewords (no last ReLU) ----
    h2 = jnp.dot(cw, fw1_ref[...], preferred_element_type=jnp.float32) + fb1_ref[...]
    h2 = jnp.maximum(h2, 0.0)
    out_ref[...] = jnp.dot(h2, fw2_ref[...], preferred_element_type=jnp.float32) + fb2_ref[...]


def pallas_block_features(dense_pts, params, pts_per_block, blocks_per_tile):
    """dense_pts: (MAX_BLOCKS*PTS_PER_BLOCK, 4) = [x,y,z,mask] -> (MAX_BLOCKS, fc_out)."""
    w1, b1, w2, b2 = params['mlp']
    fw1, fb1, fw2, fb2 = params['fc']
    h1, h2 = w1.shape[1], w2.shape[1]
    f1, f2 = fw1.shape[1], fw2.shape[1]

    r_total = dense_pts.shape[0]
    b_pad = r_total // pts_per_block
    grid = b_pad // blocks_per_tile
    tile_rows = blocks_per_tile * pts_per_block

    flops = int(2 * r_total * (3 * h1 + h1 * h2) + 2 * b_pad * (h2 * f1 + f1 * f2))
    weight_bytes = sum(int(a.size) for a in (w1, b1, w2, b2, fw1, fb1, fw2, fb2)) * 4
    bytes_accessed = int(4 * (r_total * 4 + b_pad * f2) + weight_bytes)

    return pl.pallas_call(
        _pointnet_block_kernel,
        out_shape=jax.ShapeDtypeStruct((b_pad, f2), jnp.float32),
        grid=(grid,),
        in_specs=[
            pl.BlockSpec((tile_rows, 4), lambda i: (i, 0)),     # packed [xyz, mask] tile
            pl.BlockSpec((3, h1), lambda i: (0, 0)),            # weights: constant index_map
            pl.BlockSpec((1, h1), lambda i: (0, 0)),            # -> fetched once, stay resident
            pl.BlockSpec((h1, h2), lambda i: (0, 0)),
            pl.BlockSpec((1, h2), lambda i: (0, 0)),
            pl.BlockSpec((h2, f1), lambda i: (0, 0)),
            pl.BlockSpec((1, f1), lambda i: (0, 0)),
            pl.BlockSpec((f1, f2), lambda i: (0, 0)),
            pl.BlockSpec((1, f2), lambda i: (0, 0)),
        ],
        out_specs=pl.BlockSpec((blocks_per_tile, f2), lambda i: (i, 0)),
        compiler_params=pltpu.CompilerParams(
            dimension_semantics=("parallel",),          # shards tiles across v7x's 2 TCs
            vmem_limit_bytes=32 * 1024 * 1024),         # explicit budget w/ v7x headroom
        cost_estimate=pl.CostEstimate(flops=flops, transcendentals=0,
                                      bytes_accessed=bytes_accessed),
    )(dense_pts, w1, b1, w2, b2, fw1, fb1, fw2, fb2)


# ----------------------------------------------------------------------------- forward
def make_pointnet_hetero_pallas(syntax_gt, syntax_cw, max_blocks, pts_per_block,
                                blocks_per_tile):
    """Builds the static-shape, jitted forward (ext_cw=False)."""
    # TODO(synk): ext_cw=True path (scatter_min / scatter_mean concat) not implemented.
    assert pts_per_block % 8 == 0 and blocks_per_tile % 8 == 0
    assert max_blocks % blocks_per_tile == 0
    sg, scw = syntax_gt, syntax_cw
    x0, x1 = sg['xyz']
    c0, c1 = sg['block_center']
    r_dense = max_blocks * pts_per_block

    @jax.jit
    def _core(data, params):
        batch_size, pnt_cnt, dims = data.shape
        n = batch_size * pnt_cnt
        flat = data.reshape(n, dims)

        start = flat[:, sg['block_start']] > 0
        valid = flat[:, sg['block_pntcnt']] > 0
        idx = jnp.arange(n, dtype=jnp.int32)

        block_idx = jnp.cumsum(start.astype(jnp.int32)) - 1          # (n,)
        num_blocks = jnp.sum(start.astype(jnp.int32))                 # dynamic value, static shape

        xyz = (flat[:, x0:x1 + 1] - flat[:, c0:c1 + 1]) \
            * flat[:, sg['block_scale']][:, None]

        # within-block position (block ids are sorted & contiguous by construction)
        start_row = jax.lax.cummax(jnp.where(start, idx, -1), axis=0)
        within = idx - start_row

        # single row-scatter of [x, y, z, 1.0] into the dense (max_blocks*P, 4) layout
        # TODO(synk): points beyond pts_per_block per block / beyond max_blocks are dropped.
        in_range = (valid & (block_idx >= 0) & (block_idx < max_blocks)
                    & (within < pts_per_block))
        dest = jnp.where(in_range, block_idx * pts_per_block + within, r_dense)
        vals = jnp.concatenate([xyz, jnp.ones((n, 1), jnp.float32)], axis=1)   # (n, 4)
        dense_pts = jnp.zeros((r_dense + 1, 4), jnp.float32).at[dest].set(vals)[:r_dense]

        block_feature = pallas_block_features(dense_pts, params,
                                              pts_per_block, blocks_per_tile)

        # per-block header rows (rows with block_start > 0), gathered with static shapes
        hdr_dest = jnp.where(start & (block_idx < max_blocks), block_idx, max_blocks)
        header_row = (jnp.zeros((max_blocks + 1,), jnp.int32)
                      .at[hdr_dest].set(idx)[:max_blocks])             # (max_blocks,)
        hdr = flat[header_row]                                          # (max_blocks, dims)
        pc_of_block = header_row // pnt_cnt
        pc_start = jnp.concatenate(
            [jnp.ones((1,), jnp.float32),
             (pc_of_block[1:] - pc_of_block[:-1]).astype(jnp.float32)])

        out = jnp.zeros((max_blocks, scw['__len__']), jnp.float32)
        cw0, cw1 = scw['cw']
        out = out.at[:, cw0:cw1 + 1].set(block_feature)
        out = out.at[:, scw['block_pntcnt']].set(hdr[:, sg['block_pntcnt']])
        bc0, bc1 = scw['block_center']
        out = out.at[:, bc0:bc1 + 1].set(hdr[:, c0:c1 + 1])
        out = out.at[:, scw['block_scale']].set(hdr[:, sg['block_scale']])
        out = out.at[:, scw['pc_start']].set(pc_start)
        return out, num_blocks

    def forward(data, params):
        out_padded, num_blocks = _core(data, params)
        # Single host read, only to reproduce the module's data-dependent row count;
        # everything above runs under one cached jit / Pallas binary.
        return out_padded[:int(num_blocks)]

    return forward


# ----------------------------------------------------------------------------- reference
def pointnet_hetero_forward_reference(data, params, syntax_gt, syntax_cw):
    """Pure-JAX reference mirroring the PyTorch forward exactly (ext_cw=False)."""
    sg, scw = syntax_gt, syntax_cw
    batch_size, pnt_cnt, dims = data.shape
    flat = data.reshape(-1, dims)
    start = flat[:, sg['block_start']] > 0
    valid = flat[:, sg['block_pntcnt']] > 0
    block_idx = (jnp.cumsum(start.astype(jnp.int32)) - 1)[valid]
    pc_start = jnp.repeat(jnp.arange(batch_size), pnt_cnt)[start]
    pc_start = jnp.concatenate([jnp.ones((1,), jnp.float32),
                                (pc_start[1:] - pc_start[:-1]).astype(jnp.float32)])
    d = flat[valid]
    x0, x1 = sg['xyz']
    c0, c1 = sg['block_center']
    xyz = (d[:, x0:x1 + 1] - d[:, c0:c1 + 1]) * d[:, sg['block_scale']][:, None]

    hp = jax.lax.Precision.HIGHEST
    w1, b1, w2, b2 = params['mlp']
    fw1, fb1, fw2, fb2 = params['fc']
    h = jnp.maximum(jnp.dot(xyz, w1, precision=hp) + b1, 0.0)
    feat = jnp.dot(h, w2, precision=hp) + b2
    num_blocks = int(jnp.max(block_idx)) + 1
    cw = jax.ops.segment_max(feat, block_idx, num_segments=num_blocks)
    h2 = jnp.maximum(jnp.dot(cw, fw1, precision=hp) + fb1, 0.0)
    block_feature = jnp.dot(h2, fw2, precision=hp) + fb2

    mask = d[:, sg['block_start']] > 0
    dm = d[mask]
    out = jnp.zeros((dm.shape[0], scw['__len__']), jnp.float32)
    cw0, cw1 = scw['cw']
    out = out.at[:, cw0:cw1 + 1].set(block_feature)
    out = out.at[:, scw['block_pntcnt']].set(dm[:, sg['block_pntcnt']])
    bc0, bc1 = scw['block_center']
    out = out.at[:, bc0:bc1 + 1].set(dm[:, c0:c1 + 1])
    out = out.at[:, scw['block_scale']].set(dm[:, sg['block_scale']])
    out = out.at[:, scw['pc_start']].set(pc_start)
    return out


# ----------------------------------------------------------------------------- params
def init_mlp(key, dims):
    """Deterministic nn.Linear-style init; weights stored pre-transposed as (in, out)."""
    params = []
    for i in range(len(dims) - 1):
        key, kw, kb = jax.random.split(key, 3)
        bound = 1.0 / float(dims[i]) ** 0.5
        w = jax.random.uniform(kw, (dims[i], dims[i + 1]), jnp.float32, -bound, bound)
        b = jax.random.uniform(kb, (1, dims[i + 1]), jnp.float32, -bound, bound)
        params += [w, b]
    return key, tuple(params)


# ----------------------------------------------------------------------------- main
if __name__ == "__main__":
    # net_config: mlp_dims / fc_dims, ext_cw=False, mlp_dolastrelu=False
    mlp_dims = [3, 32, 32]
    fc_dims = [32, 32, 16]

    syntax_gt = {'xyz': [0, 2], 'block_center': [3, 5], 'block_scale': 6,
                 'block_pntcnt': 7, 'block_start': 8}
    cw_len = fc_dims[-1]
    syntax_cw = {'cw': [0, cw_len - 1], 'block_pntcnt': cw_len,
                 'block_center': [cw_len + 1, cw_len + 3],
                 'block_scale': cw_len + 4, 'pc_start': cw_len + 5,
                 '__len__': cw_len + 6}

    key = jax.random.PRNGKey(0)
    key, p_mlp = init_mlp(key, mlp_dims)
    key, p_fc = init_mlp(key, fc_dims)
    params = {'mlp': p_mlp, 'fc': p_fc}

    batch_size, pnt_cnt, dims = 2, 16, 9
    # block layout: pc0 -> blocks of 5,4,3 valid points + 4 padding rows
    #               pc1 -> blocks of 6,6 valid points + 4 padding rows
    block_sizes = [[5, 4, 3], [6, 6]]

    key, kx, kc, ks = jax.random.split(key, 4)
    xyz_all = jax.random.normal(kx, (batch_size, pnt_cnt, 3), jnp.float32)
    centers = jax.random.normal(kc, (8, 3), jnp.float32)
    scales = jax.random.uniform(ks, (8,), jnp.float32, 0.5, 2.0)

    data = jnp.zeros((batch_size, pnt_cnt, dims), jnp.float32)
    data = data.at[:, :, 0:3].set(xyz_all)
    blk = 0
    for b, sizes in enumerate(block_sizes):
        row = 0
        for sz in sizes:
            data = data.at[b, row, 8].set(1.0)                       # block_start
            data = data.at[b, row:row + sz, 7].set(float(sz))        # block_pntcnt
            data = data.at[b, row:row + sz, 3:6].set(centers[blk])   # block_center
            data = data.at[b, row:row + sz, 6].set(scales[blk])      # block_scale
            row += sz
            blk += 1
        # trailing rows stay zero -> padding (block_pntcnt == 0, block_start == 0)

    # Static tiling.  Real deployments: target_tile_rows ~1024 (>=85% HBM roofline);
    # here we use a tiny target so the toy problem still exercises a multi-step grid.
    MAX_BLOCKS, PTS_PER_BLOCK, BLOCKS_PER_TILE = choose_tiling(
        num_blocks_hint=16, max_pts_per_block=6, target_tile_rows=64)

    forward = make_pointnet_hetero_pallas(syntax_gt, syntax_cw,
                                          MAX_BLOCKS, PTS_PER_BLOCK, BLOCKS_PER_TILE)
    out = forward(data, params)
    out = jax.block_until_ready(out)

    ref = pointnet_hetero_forward_reference(data, params, syntax_gt, syntax_cw)
    assert out.shape == ref.shape, (out.shape, ref.shape)
    assert bool(jnp.all(jnp.isfinite(out)))
    assert bool(jnp.allclose(out, ref, rtol=1e-3, atol=1e-3)), \
        float(jnp.max(jnp.abs(out - ref)))

    print("KERNEL_OK")
</pallas_src>

<mosaic_0001>
module attributes {stable_mosaic.version = 11 : i64} {
  func.func @_pointnet_block_kernel(%arg0: i32, %arg1: memref<64x4xf32, #tpu.memory_space<vmem>>, %arg2: memref<3x32xf32, #tpu.memory_space<vmem>>, %arg3: memref<1x32xf32, #tpu.memory_space<vmem>>, %arg4: memref<32x32xf32, #tpu.memory_space<vmem>>, %arg5: memref<1x32xf32, #tpu.memory_space<vmem>>, %arg6: memref<32x32xf32, #tpu.memory_space<vmem>>, %arg7: memref<1x32xf32, #tpu.memory_space<vmem>>, %arg8: memref<32x16xf32, #tpu.memory_space<vmem>>, %arg9: memref<1x16xf32, #tpu.memory_space<vmem>>, %arg10: memref<8x16xf32, #tpu.memory_space<vmem>>) attributes {dimension_semantics = [#tpu.dimension_semantics<parallel>], iteration_bounds = array<i64: 2>, scalar_prefetch = 0 : i64, scratch_operands = 0 : i64, tpu.core_type = #tpu.core_type<tc>, window_params = [{transform_indices = @transform_0, window_bounds = array<i64: 64, 4>}, {pipeline_mode = #tpu.pipeline_mode<synchronous>, transform_indices = @transform_1, window_bounds = array<i64: 3, 32>}, {pipeline_mode = #tpu.pipeline_mode<synchronous>, transform_indices = @transform_2, window_bounds = array<i64: 1, 32>}, {pipeline_mode = #tpu.pipeline_mode<synchronous>, transform_indices = @transform_3, window_bounds = array<i64: 32, 32>}, {pipeline_mode = #tpu.pipeline_mode<synchronous>, transform_indices = @transform_4, window_bounds = array<i64: 1, 32>}, {pipeline_mode = #tpu.pipeline_mode<synchronous>, transform_indices = @transform_5, window_bounds = array<i64: 32, 32>}, {pipeline_mode = #tpu.pipeline_mode<synchronous>, transform_indices = @transform_6, window_bounds = array<i64: 1, 32>}, {pipeline_mode = #tpu.pipeline_mode<synchronous>, transform_indices = @transform_7, window_bounds = array<i64: 32, 16>}, {pipeline_mode = #tpu.pipeline_mode<synchronous>, transform_indices = @transform_8, window_bounds = array<i64: 1, 16>}, {transform_indices = @transform_9, window_bounds = array<i64: 8, 16>}]} {
    %c0 = arith.constant 0 : index
    %c0_0 = arith.constant 0 : index
    %0 = vector.load %arg1[%c0, %c0_0] : memref<64x4xf32, #tpu.memory_space<vmem>>, vector<64x4xf32>
    %c0_1 = arith.constant 0 : index
    %c0_2 = arith.constant 0 : index
    %1 = vector.load %arg2[%c0_1, %c0_2] : memref<3x32xf32, #tpu.memory_space<vmem>>, vector<3x32xf32>
    %2 = vector.extract_strided_slice %0 {offsets = [0, 0], sizes = [64, 1], strides = [1, 1]} : vector<64x4xf32> to vector<64x1xf32>
    %3 = vector.extract_strided_slice %1 {offsets = [0, 0], sizes = [1, 32], strides = [1, 1]} : vector<3x32xf32> to vector<1x32xf32>
    %4 = vector.broadcast %2 : vector<64x1xf32> to vector<64x32xf32>
    %5 = vector.broadcast %3 : vector<1x32xf32> to vector<64x32xf32>
    %6 = arith.mulf %4, %5 : vector<64x32xf32>
    %7 = vector.extract_strided_slice %0 {offsets = [0, 1], sizes = [64, 1], strides = [1, 1]} : vector<64x4xf32> to vector<64x1xf32>
    %8 = vector.extract_strided_slice %1 {offsets = [1, 0], sizes = [1, 32], strides = [1, 1]} : vector<3x32xf32> to vector<1x32xf32>
    %9 = vector.broadcast %7 : vector<64x1xf32> to vector<64x32xf32>
    %10 = vector.broadcast %8 : vector<1x32xf32> to vector<64x32xf32>
    %11 = arith.mulf %9, %10 : vector<64x32xf32>
    %12 = arith.addf %6, %11 : vector<64x32xf32>
    %13 = vector.extract_strided_slice %0 {offsets = [0, 2], sizes = [64, 1], strides = [1, 1]} : vector<64x4xf32> to vector<64x1xf32>
    %14 = vector.extract_strided_slice %1 {offsets = [2, 0], sizes = [1, 32], strides = [1, 1]} : vector<3x32xf32> to vector<1x32xf32>
    %15 = vector.broadcast %13 : vector<64x1xf32> to vector<64x32xf32>
    %16 = vector.broadcast %14 : vector<1x32xf32> to vector<64x32xf32>
    %17 = arith.mulf %15, %16 : vector<64x32xf32>
    %18 = arith.addf %12, %17 : vector<64x32xf32>
    %c0_3 = arith.constant 0 : index
    %c0_4 = arith.constant 0 : index
    %19 = vector.load %arg3[%c0_3, %c0_4] : memref<1x32xf32, #tpu.memory_space<vmem>>, vector<1x32xf32>
    %20 = vector.broadcast %19 : vector<1x32xf32> to vector<64x32xf32>
    %21 = arith.addf %18, %20 : vector<64x32xf32>
    %cst = arith.constant 0.000000e+00 : f32
    %22 = vector.broadcast %cst : f32 to vector<64x32xf32>
    %23 = arith.maximumf %21, %22 : vector<64x32xf32>
    %c0_5 = arith.constant 0 : index
    %c0_6 = arith.constant 0 : index
    %24 = vector.load %arg4[%c0_5, %c0_6] : memref<32x32xf32, #tpu.memory_space<vmem>>, vector<32x32xf32>
    %cst_7 = arith.constant dense<0.000000e+00> : vector<64x32xf32>
    %25 = tpu.matmul %23, %24, %cst_7 {dimension_numbers = #tpu.dot_dimension_numbers<[1], [0], [0], [1], [0, 0, 1, 1], [], []>} : vector<64x32xf32>, vector<32x32xf32>, vector<64x32xf32> -> vector<64x32xf32>
    %c0_8 = arith.constant 0 : index
    %c0_9 = arith.constant 0 : index
    %26 = vector.load %arg5[%c0_8, %c0_9] : memref<1x32xf32, #tpu.memory_space<vmem>>, vector<1x32xf32>
    %27 = vector.broadcast %26 : vector<1x32xf32> to vector<64x32xf32>
    %28 = arith.addf %25, %27 : vector<64x32xf32>
    %29 = vector.extract_strided_slice %0 {offsets = [0, 3], sizes = [64, 1], strides = [1, 1]} : vector<64x4xf32> to vector<64x1xf32>
    %cst_10 = arith.constant 0.000000e+00 : f32
    %30 = vector.broadcast %cst_10 : f32 to vector<64x1xf32>
    %31 = arith.cmpf ogt, %29, %30 : vector<64x1xf32>
    %cst_11 = arith.constant -3.000000e+38 : f32
    %32 = vector.shape_cast %31 : vector<64x1xi1> to vector<64x1xi1>
    %33 = vector.broadcast %32 : vector<64x1xi1> to vector<64x32xi1>
    %34 = vector.broadcast %cst_11 : f32 to vector<64x32xf32>
    %35 = arith.select %33, %28, %34 : vector<64x32xi1>, vector<64x32xf32>
    %36 = vector.shape_cast %35 : vector<64x32xf32> to vector<8x8x32xf32>
    %cst_12 = arith.constant dense<0xFF800000> : vector<8x32xf32>
    %37 = vector.multi_reduction <maximumf>, %36, %cst_12 [1] : vector<8x8x32xf32> to vector<8x32xf32>
    %cst_13 = arith.constant -3.000000e+38 : f32
    %cst_14 = arith.constant 5.000000e-01 : f32
    %38 = arith.mulf %cst_13, %cst_14 : f32
    %39 = vector.broadcast %38 : f32 to vector<8x32xf32>
    %40 = arith.cmpf ole, %37, %39 : vector<8x32xf32>
    %cst_15 = arith.constant 0.000000e+00 : f32
    %41 = vector.broadcast %cst_15 : f32 to vector<8x32xf32>
    %42 = arith.select %40, %41, %37 : vector<8x32xi1>, vector<8x32xf32>
    %c0_16 = arith.constant 0 : index
    %c0_17 = arith.constant 0 : index
    %43 = vector.load %arg6[%c0_16, %c0_17] : memref<32x32xf32, #tpu.memory_space<vmem>>, vector<32x32xf32>
    %cst_18 = arith.constant dense<0.000000e+00> : vector<8x32xf32>
    %44 = tpu.matmul %42, %43, %cst_18 {dimension_numbers = #tpu.dot_dimension_numbers<[1], [0], [0], [1], [0, 0, 1, 1], [], []>} : vector<8x32xf32>, vector<32x32xf32>, vector<8x32xf32> -> vector<8x32xf32>
    %c0_19 = arith.constant 0 : index
    %c0_20 = arith.constant 0 : index
    %45 = vector.load %arg7[%c0_19, %c0_20] : memref<1x32xf32, #tpu.memory_space<vmem>>, vector<1x32xf32>
    %46 = vector.broadcast %45 : vector<1x32xf32> to vector<8x32xf32>
    %47 = arith.addf %44, %46 : vector<8x32xf32>
    %cst_21 = arith.constant 0.000000e+00 : f32
    %48 = vector.broadcast %cst_21 : f32 to vector<8x32xf32>
    %49 = arith.maximumf %47, %48 : vector<8x32xf32>
    %c0_22 = arith.constant 0 : index
    %c0_23 = arith.constant 0 : index
    %50 = vector.load %arg8[%c0_22, %c0_23] : memref<32x16xf32, #tpu.memory_space<vmem>>, vector<32x16xf32>
    %cst_24 = arith.constant dense<0.000000e+00> : vector<8x16xf32>
    %51 = tpu.matmul %49, %50, %cst_24 {dimension_numbers = #tpu.dot_dimension_numbers<[1], [0], [0], [1], [0, 0, 1, 1], [], []>} : vector<8x32xf32>, vector<32x16xf32>, vector<8x16xf32> -> vector<8x16xf32>
    %c0_25 = arith.constant 0 : index
    %c0_26 = arith.constant 0 : index
    %52 = vector.load %arg9[%c0_25, %c0_26] : memref<1x16xf32, #tpu.memory_space<vmem>>, vector<1x16xf32>
    %53 = vector.broadcast %52 : vector<1x16xf32> to vector<8x16xf32>
    %54 = arith.addf %51, %53 : vector<8x16xf32>
    %c0_27 = arith.constant 0 : index
    %c0_28 = arith.constant 0 : index
    %55 = vector.load %arg10[%c0_27, %c0_28] : memref<8x16xf32, #tpu.memory_space<vmem>>, vector<8x16xf32>
    tpu.vector_store %arg10[%c0_27, %c0_28], %54 {strides = array<i32>} : memref<8x16xf32, #tpu.memory_space<vmem>>, vector<8x16xf32>,
    return
  }
  func.func @transform_0(%arg0: i32) -> (i32, i32) {
    %c0_i32 = arith.constant 0 : i32
    %c0_i32_0 = arith.constant 0 : i32
    return %arg0, %c0_i32 : i32, i32
  }
  func.func @transform_1(%arg0: i32) -> (i32, i32) {
    %c0_i32 = arith.constant 0 : i32
    %c0_i32_0 = arith.constant 0 : i32
    %c0_i32_1 = arith.constant 0 : i32
    return %c0_i32, %c0_i32_0 : i32, i32
  }
  func.func @transform_2(%arg0: i32) -> (i32, i32) {
    %c0_i32 = arith.constant 0 : i32
    %c0_i32_0 = arith.constant 0 : i32
    %c0_i32_1 = arith.constant 0 : i32
    return %c0_i32, %c0_i32_0 : i32, i32
  }
  func.func @transform_3(%arg0: i32) -> (i32, i32) {
    %c0_i32 = arith.constant 0 : i32
    %c0_i32_0 = arith.constant 0 : i32
    %c0_i32_1 = arith.constant 0 : i32
    return %c0_i32, %c0_i32_0 : i32, i32
  }
  func.func @transform_4(%arg0: i32) -> (i32, i32) {
    %c0_i32 = arith.constant 0 : i32
    %c0_i32_0 = arith.constant 0 : i32
    %c0_i32_1 = arith.constant 0 : i32
    return %c0_i32, %c0_i32_0 : i32, i32
  }
  func.func @transform_5(%arg0: i32) -> (i32, i32) {
    %c0_i32 = arith.constant 0 : i32
    %c0_i32_0 = arith.constant 0 : i32
    %c0_i32_1 = arith.constant 0 : i32
    return %c0_i32, %c0_i32_0 : i32, i32
  }
  func.func @transform_6(%arg0: i32) -> (i32, i32) {
    %c0_i32 = arith.constant 0 : i32
    %c0_i32_0 = arith.constant 0 : i32
    %c0_i32_1 = arith.constant 0 : i32
    return %c0_i32, %c0_i32_0 : i32, i32
  }
  func.func @transform_7(%arg0: i32) -> (i32, i32) {
    %c0_i32 = arith.constant 0 : i32
    %c0_i32_0 = arith.constant 0 : i32
    %c0_i32_1 = arith.constant 0 : i32
    return %c0_i32, %c0_i32_0 : i32, i32
  }
  func.func @transform_8(%arg0: i32) -> (i32, i32) {
    %c0_i32 = arith.constant 0 : i32
    %c0_i32_0 = arith.constant 0 : i32
    %c0_i32_1 = arith.constant 0 : i32
    return %c0_i32, %c0_i32_0 : i32, i32
  }
  func.func @transform_9(%arg0: i32) -> (i32, i32) {
    %c0_i32 = arith.constant 0 : i32
    %c0_i32_0 = arith.constant 0 : i32
    return %arg0, %c0_i32 : i32, i32
  }
}

</mosaic_0001>

<llo_original>
// kernel: _core.1
$region0: #{_core.1}
  #allocation0 [shape = 'u32[]', space=smem, size = 0x4, offset = 0x4, fixed_abs, tag = 'smem constant byte address 0x4 - core index']
  #allocation1 [shape = 'u32[144,128]{1,0:T(1,128)}', space=vmem, size = 0x12000, scoped, tag = 'internal scratch']
  %s0 = inlined_call_operand.vmem [shape: f32[128,4], index: 0, kind: input, shape index: {}]
  %s1 = inlined_call_operand.vmem [shape: f32[3,32], index: 1, kind: input, shape index: {}]
  %s2 = inlined_call_operand.vmem [shape: f32[1,32], index: 2, kind: input, shape index: {}]
  %s3 = inlined_call_operand.vmem [shape: f32[32,32], index: 3, kind: input, shape index: {}]
  %s4 = inlined_call_operand.vmem [shape: f32[1,32], index: 4, kind: input, shape index: {}]
  %s5 = inlined_call_operand.vmem [shape: f32[32,32], index: 5, kind: input, shape index: {}]
  %s6 = inlined_call_operand.vmem [shape: f32[1,32], index: 6, kind: input, shape index: {}]
  %s7 = inlined_call_operand.vmem [shape: f32[32,16], index: 7, kind: input, shape index: {}]
  %s8 = inlined_call_operand.vmem [shape: f32[1,16], index: 8, kind: input, shape index: {}]
  %s9 = inlined_call_operand.vmem [shape: f32[16,16], index: 9, kind: output, shape index: {}]
  %s10 = sld [smem:[#allocation0]]
  $region69: #{_core.1} parent=0
    _
  %s12 = ssub.s32 1, %s10
  %s13 = scalar_select 0, %s12, %s10
  loop: start=0, step=1, limit=4
  $region2: #{_core.1} parent=0 // loop_pre_header
    _
  $region3: #{_core.1} parent=0 // loop_header
    %s15 = sphi 0, %s19
    %p16 = scmp.ge.s32.totalorder %s15, 4
    %s25 = sphi 0, %s27
    %s28 = sphi 0, %s25
    %s29 = sphi 0, %s28
    %s45 = sphi 0, %s29
    %s49 = sphi 0, %s49
    %s51 = sphi 0, %s49
    %s52 = sphi 0, %s51
    %s66 = sphi 0, %s52
    %s70 = sphi 0, %s70
    %s72 = sphi 0, %s70
    %s73 = sphi 0, %s72
    %s87 = sphi 0, %s73
    %s91 = sphi 0, %s91
    %s93 = sphi 0, %s91
    %s94 = sphi 0, %s93
    %s108 = sphi 0, %s94
    %s112 = sphi 0, %s112
    %s114 = sphi 0, %s112
    %s115 = sphi 0, %s114
    %s129 = sphi 0, %s115
    %s133 = sphi 0, %s133
    %s135 = sphi 0, %s133
    %s136 = sphi 0, %s135
    %s150 = sphi 0, %s136
    %s154 = sphi 0, %s154
    %s156 = sphi 0, %s154
    %s157 = sphi 0, %s156
    %s171 = sphi 0, %s157
    %s175 = sphi 0, %s175
    %s177 = sphi 0, %s175
    %s178 = sphi 0, %s177
    %s192 = sphi 0, %s178
    %s196 = sphi 0, %s196
    %s198 = sphi 0, %s196
    %s199 = sphi 0, %s198
    %s213 = sphi 0, %s199
    %s219 = sphi 0, %s221
    %s222 = sphi 0, %s219
    %s223 = sphi 0, %s222
    %s239 = sphi 0, %s223
  $region4: #{_core.1} parent=0 // loop_header_branch
    %18 = sbr.rel (%p16) target = $region8
  $region5: #{_core.1} parent=0 // loop_body
    %s20 = ssub.s32 %s15, 1
    %s21 = ssub.s32 %s15, 2
    %s22 = sadd.s32 %s15, 1
    %s23 = ssub.s32 %s15, %s22
    %p24 = scmp.eq.s32.totalorder %s23, 0
    %s26 = sadd.s32 %s25, 1
    %s27 = scalar_select %p24, %s25, %s26
    %p30 = pneg %p24
    %p31 = scmp.eq.s32.totalorder %s15, 1
    %p32 = por %p30, %p31
    %p33 = scmp.ne.s32.totalorder %s25, %s28
    %p34 = scmp.eq.s32.totalorder %s15, 0
    %p35 = por %p33, %p34
    %p36 = scmp.ne.s32.totalorder %s25, %s28
    %p37 = scmp.eq.s32.totalorder %s20, 1
    %p38 = por %p36, %p37
    %p39 = scmp.ne.s32.totalorder %s28, %s29
    %p40 = scmp.eq.s32.totalorder %s20, 0
    %p41 = por %p39, %p40
    %p42 = scmp.ne.s32.totalorder %s28, %s29
    %p43 = scmp.eq.s32.totalorder %s21, 1
    %p44 = por %p42, %p43
    %p46 = scmp.ne.s32.totalorder %s29, %s45
    %p47 = scmp.eq.s32.totalorder %s21, 0
    %p48 = por %p46, %p47
    %s50 = sadd.s32 %s49, 1
    %p53 = scmp.eq.s32.totalorder %s15, 1
    %p54 = scmp.ne.s32.totalorder %s49, %s51
    %p55 = scmp.eq.s32.totalorder %s15, 0
    %p56 = por %p54, %p55
    %p57 = scmp.ne.s32.totalorder %s49, %s51
    %p58 = scmp.eq.s32.totalorder %s20, 1
    %p59 = por %p57, %p58
    %p60 = scmp.ne.s32.totalorder %s51, %s52
    %p61 = scmp.eq.s32.totalorder %s20, 0
    %p62 = por %p60, %p61
    %p63 = scmp.ne.s32.totalorder %s51, %s52
    %p64 = scmp.eq.s32.totalorder %s21, 1
    %p65 = por %p63, %p64
    %p67 = scmp.ne.s32.totalorder %s52, %s66
    %p68 = scmp.eq.s32.totalorder %s21, 0
    %p69 = por %p67, %p68
    %s71 = sadd.s32 %s70, 1
    %p74 = scmp.eq.s32.totalorder %s15, 1
    %p75 = scmp.ne.s32.totalorder %s70, %s72
    %p76 = scmp.eq.s32.totalorder %s15, 0
    %p77 = por %p75, %p76
    %p78 = scmp.ne.s32.totalorder %s70, %s72
    %p79 = scmp.eq.s32.totalorder %s20, 1
    %p80 = por %p78, %p79
    %p81 = scmp.ne.s32.totalorder %s72, %s73
    %p82 = scmp.eq.s32.totalorder %s20, 0
    %p83 = por %p81, %p82
    %p84 = scmp.ne.s32.totalorder %s72, %s73
    %p85 = scmp.eq.s32.totalorder %s21, 1
    %p86 = por %p84, %p85
    %p88 = scmp.ne.s32.totalorder %s73, %s87
    %p89 = scmp.eq.s32.totalorder %s21, 0
    %p90 = por %p88, %p89
    %s92 = sadd.s32 %s91, 1
    %p95 = scmp.eq.s32.totalorder %s15, 1
    %p96 = scmp.ne.s32.totalorder %s91, %s93
    %p97 = scmp.eq.s32.totalorder %s15, 0
    %p98 = por %p96, %p97
    %p99 = scmp.ne.s32.totalorder %s91, %s93
    %p100 = scmp.eq.s32.totalorder %s20, 1
    %p101 = por %p99, %p100
    %p102 = scmp.ne.s32.totalorder %s93, %s94
    %p103 = scmp.eq.s32.totalorder %s20, 0
    %p104 = por %p102, %p103
    %p105 = scmp.ne.s32.totalorder %s93, %s94
    %p106 = scmp.eq.s32.totalorder %s21, 1
    %p107 = por %p105, %p106
    %p109 = scmp.ne.s32.totalorder %s94, %s108
    %p110 = scmp.eq.s32.totalorder %s21, 0
    %p111 = por %p109, %p110
    %s113 = sadd.s32 %s112, 1
    %p116 = scmp.eq.s32.totalorder %s15, 1
    %p117 = scmp.ne.s32.totalorder %s112, %s114
    %p118 = scmp.eq.s32.totalorder %s15, 0
    %p119 = por %p117, %p118
    %p120 = scmp.ne.s32.totalorder %s112, %s114
    %p121 = scmp.eq.s32.totalorder %s20, 1
    %p122 = por %p120, %p121
    %p123 = scmp.ne.s32.totalorder %s114, %s115
    %p124 = scmp.eq.s32.totalorder %s20, 0
    %p125 = por %p123, %p124
    %p126 = scmp.ne.s32.totalorder %s114, %s115
    %p127 = scmp.eq.s32.totalorder %s21, 1
    %p128 = por %p126, %p127
    %p130 = scmp.ne.s32.totalorder %s115, %s129
    %p131 = scmp.eq.s32.totalorder %s21, 0
    %p132 = por %p130, %p131
    %s134 = sadd.s32 %s133, 1
    %p137 = scmp.eq.s32.totalorder %s15, 1
    %p138 = scmp.ne.s32.totalorder %s133, %s135
    %p139 = scmp.eq.s32.totalorder %s15, 0
    %p140 = por %p138, %p139
    %p141 = scmp.ne.s32.totalorder %s133, %s135
    %p142 = scmp.eq.s32.totalorder %s20, 1
    %p143 = por %p141, %p142
    %p144 = scmp.ne.s32.totalorder %s135, %s136
    %p145 = scmp.eq.s32.totalorder %s20, 0
    %p146 = por %p144, %p145
    %p147 = scmp.ne.s32.totalorder %s135, %s136
    %p148 = scmp.eq.s32.totalorder %s21, 1
    %p149 = por %p147, %p148
    %p151 = scmp.ne.s32.totalorder %s136, %s150
    %p152 = scmp.eq.s32.totalorder %s21, 0
    %p153 = por %p151, %p152
    %s155 = sadd.s32 %s154, 1
    %p158 = scmp.eq.s32.totalorder %s15, 1
    %p159 = scmp.ne.s32.totalorder %s154, %s156
    %p160 = scmp.eq.s32.totalorder %s15, 0
    %p161 = por %p159, %p160
    %p162 = scmp.ne.s32.totalorder %s154, %s156
    %p163 = scmp.eq.s32.totalorder %s20, 1
    %p164 = por %p162, %p163
    %p165 = scmp.ne.s32.totalorder %s156, %s157
    %p166 = scmp.eq.s32.totalorder %s20, 0
    %p167 = por %p165, %p166
    %p168 = scmp.ne.s32.totalorder %s156, %s157
    %p169 = scmp.eq.s32.totalorder %s21, 1
    %p170 = por %p168, %p169
    %p172 = scmp.ne.s32.totalorder %s157, %s171
    %p173 = scmp.eq.s32.totalorder %s21, 0
    %p174 = por %p172, %p173
    %s176 = sadd.s32 %s175, 1
    %p179 = scmp.eq.s32.totalorder %s15, 1
    %p180 = scmp.ne.s32.totalorder %s175, %s177
    %p181 = scmp.eq.s32.totalorder %s15, 0
    %p182 = por %p180, %p181
    %p183 = scmp.ne.s32.totalorder %s175, %s177
    %p184 = scmp.eq.s32.totalorder %s20, 1
    %p185 = por %p183, %p184
    %p186 = scmp.ne.s32.totalorder %s177, %s178
    %p187 = scmp.eq.s32.totalorder %s20, 0
    %p188 = por %p186, %p187
    %p189 = scmp.ne.s32.totalorder %s177, %s178
    %p190 = scmp.eq.s32.totalorder %s21, 1
    %p191 = por %p189, %p190
    %p193 = scmp.ne.s32.totalorder %s178, %s192
    %p194 = scmp.eq.s32.totalorder %s21, 0
    %p195 = por %p193, %p194
    %s197 = sadd.s32 %s196, 1
    %p200 = scmp.eq.s32.totalorder %s15, 1
    %p201 = scmp.ne.s32.totalorder %s196, %s198
    %p202 = scmp.eq.s32.totalorder %s15, 0
    %p203 = por %p201, %p202
    %p204 = scmp.ne.s32.totalorder %s196, %s198
    %p205 = scmp.eq.s32.totalorder %s20, 1
    %p206 = por %p204, %p205
    %p207 = scmp.ne.s32.totalorder %s198, %s199
    %p208 = scmp.eq.s32.totalorder %s20, 0
    %p209 = por %p207, %p208
    %p210 = scmp.ne.s32.totalorder %s198, %s199
    %p211 = scmp.eq.s32.totalorder %s21, 1
    %p212 = por %p210, %p211
    %p214 = scmp.ne.s32.totalorder %s199, %s213
    %p215 = scmp.eq.s32.totalorder %s21, 0
    %p216 = por %p214, %p215
    %s217 = ssub.s32 %s15, %s22
    %p218 = scmp.eq.s32.totalorder %s217, 0
    %s220 = sadd.s32 %s219, 1
    %s221 = scalar_select %p218, %s219, %s220
    %p224 = pneg %p218
    %p225 = scmp.eq.s32.totalorder %s15, 1
    %p226 = por %p224, %p225
    %p227 = scmp.ne.s32.totalorder %s219, %s222
    %p228 = scmp.eq.s32.totalorder %s15, 0
    %p229 = por %p227, %p228
    %p230 = scmp.ne.s32.totalorder %s219, %s222
    %p231 = scmp.eq.s32.totalorder %s20, 1
    %p232 = por %p230, %p231
    %p233 = scmp.ne.s32.totalorder %s222, %s223
    %p234 = scmp.eq.s32.totalorder %s20, 0
    %p235 = por %p233, %p234
    %p236 = scmp.ne.s32.totalorder %s222, %s223
    %p237 = scmp.eq.s32.totalorder %s21, 1
    %p238 = por %p236, %p237
    %p240 = scmp.ne.s32.totalorder %s223, %s239
    %p241 = scmp.eq.s32.totalorder %s21, 0
    %p242 = por %p240, %p241
    %p243 = scmp.le.s32.totalorder 1, %s15
    %p244 = scmp.lt.s32.totalorder %s15, 3
    %p245 = pnand %p243, %p244
    %p246 = pneg %p245
    // Predicated region
    $region9: #{_core.1} parent=5 // pred_check
      _
    $region10: #{_core.1} parent=5 // pred_check_branch
      %248 = sbr.rel (%p245) target = $region12
    $region11: #{_core.1} parent=5 // pred_region
      %s249 = ssub.s32 %s15, 1
      // Predicated region
      $region13: #{_core.1} parent=11 // pred_check
        %p250 = pneg %p62
      $region14: #{_core.1} parent=11 // pred_check_branch
        %252 = sbr.rel (%p250) target = $region16
      $region15: #{_core.1} parent=11 // pred_region
        _
      $region16: #{_core.1} parent=11 // pred_fallthru
        _
      // Predicated region
      $region17: #{_core.1} parent=11 // pred_check
        %p253 = pneg %p83
      $region18: #{_core.1} parent=11 // pred_check_branch
        %255 = sbr.rel (%p253) target = $region20
      $region19: #{_core.1} parent=11 // pred_region
        _
      $region20: #{_core.1} parent=11 // pred_fallthru
        _
      // Predicated region
      $region21: #{_core.1} parent=11 // pred_check
        %p256 = pneg %p104
      $region22: #{_core.1} parent=11 // pred_check_branch
        %258 = sbr.rel (%p256) target = $region24
      $region23: #{_core.1} parent=11 // pred_region
        _
      $region24: #{_core.1} parent=11 // pred_fallthru
        _
      // Predicated region
      $region25: #{_core.1} parent=11 // pred_check
        %p259 = pneg %p125
      $region26: #{_core.1} parent=11 // pred_check_branch
        %261 = sbr.rel (%p259) target = $region28
      $region27: #{_core.1} parent=11 // pred_region
        _
      $region28: #{_core.1} parent=11 // pred_fallthru
        _
      // Predicated region
      $region29: #{_core.1} parent=11 // pred_check
        %p262 = pneg %p146
      $region30: #{_core.1} parent=11 // pred_check_branch
        %264 = sbr.rel (%p262) target = $region32
      $region31: #{_core.1} parent=11 // pred_region
        _
      $region32: #{_core.1} parent=11 // pred_fallthru
        _
      // Predicated region
      $region33: #{_core.1} parent=11 // pred_check
        %p265 = pneg %p167
      $region34: #{_core.1} parent=11 // pred_check_branch
        %267 = sbr.rel (%p265) target = $region36
      $region35: #{_core.1} parent=11 // pred_region
        _
      $region36: #{_core.1} parent=11 // pred_fallthru
        _
      // Predicated region
      $region37: #{_core.1} parent=11 // pred_check
        %p268 = pneg %p188
      $region38: #{_core.1} parent=11 // pred_check_branch
        %270 = sbr.rel (%p268) target = $region40
      $region39: #{_core.1} parent=11 // pred_region
        _
      $region40: #{_core.1} parent=11 // pred_fallthru
        _
      // Predicated region
      $region41: #{_core.1} parent=11 // pred_check
        %p271 = pneg %p209
      $region42: #{_core.1} parent=11 // pred_check_branch
        %273 = sbr.rel (%p271) target = $region44
      $region43: #{_core.1} parent=11 // pred_region
        _
      $region44: #{_core.1} parent=11 // pred_fallthru
        _
    $region12: #{_core.1} parent=5 // pred_fallthru
      _
    %p274 = scmp.lt.s32.totalorder %s15, 2
    // Predicated region
    $region45: #{_core.1} parent=5 // pred_check
      %p275 = pneg %p274
    $region46: #{_core.1} parent=5 // pred_check_branch
      %277 = sbr.rel (%p275) target = $region48
    $region47: #{_core.1} parent=5 // pred_region
      // Predicated region
      $region49: #{_core.1} parent=47 // pred_check
        %p278 = pneg %p35
      $region50: #{_core.1} parent=47 // pred_check_branch
        %280 = sbr.rel (%p278) target = $region52
      $region51: #{_core.1} parent=47 // pred_region
        %s281 = smul.u32 8, %s15
        %p282 = scmp.lt.s32.totalorder %s281, 15
        %s283 = scalar_select %p282, %s281, 15
        %s284 = smul.addr %s283, 8
        %s285 = scalar_lea.vmem %s0, %s284
        %s286 = smul.u32 8, %s15
      $region52: #{_core.1} parent=47 // pred_fallthru
        _
    $region48: #{_core.1} parent=5 // pred_fallthru
      _
    %p287 = scmp.le.s32.totalorder 1, %s15
    %p288 = scmp.lt.s32.totalorder %s15, 3
    %p289 = pnand %p287, %p288
    %p290 = pneg %p289
    // Predicated region
    $region53: #{_core.1} parent=5 // pred_check
      _
    $region54: #{_core.1} parent=5 // pred_check_branch
      %292 = sbr.rel (%p289) target = $region56
    $region55: #{_core.1} parent=5 // pred_region
      %s293 = ssub.s32 %s15, 1
      %s294 = smul.u32 8, %s20
      %p295 = scmp.lt.s32.totalorder %s294, 15
      %s296 = scalar_select %p295, %s294, 15
      %s297 = smul.addr %s296, 8
      %s298 = scalar_lea.vmem %s0, %s297
      %p299 = pneg %p41
      %p300 = pneg %p38
      %p301 = pneg %p62
      %p302 = pneg %p59
      %p303 = pneg %p83
      %p304 = pneg %p80
      %p305 = pneg %p104
      %p306 = pneg %p101
      %p307 = pneg %p125
      %p308 = pneg %p122
      %p309 = pneg %p146
      %p310 = pneg %p143
      %p311 = pneg %p167
      %p312 = pneg %p164
      %p313 = pneg %p188
      %p314 = pneg %p185
      %p315 = pneg %p209
      %p316 = pneg %p206
      %p317 = pneg %p235
      %p318 = pneg %p232
      %p319 = scmp.lt.s32.totalorder %s20, 1
      %s320 = scalar_select %p319, %s20, 1
      %s321 = smul.addr %s320, 8
      %s322 = scalar_lea.vmem %s9, %s321
      %s323 = smul.u32 8, %s20
      %p324 = scmp.lt.s32.totalorder %s323, 15
      %s325 = scalar_select %p324, %s323, 15
      %s326 = smul.addr %s325, 8
      %s327 = scalar_lea.vmem %s0, %s326
      %s328 = smul.u32 8, %s20
      %p329 = scmp.lt.s32.totalorder %s20, 1
      %s330 = scalar_select %p329, %s20, 1
      %s331 = smul.addr %s330, 8
      %s332 = scalar_lea.vmem %s9, %s331
      %v333 = vld [vmem:[%s327] sm:$0xff]
      %v334 = vld [vmem:[%s327 + $0x8] sm:$0xff]
      %v335 = vld [vmem:[%s327 + $0x10] sm:$0xff]
      %v336 = vld [vmem:[%s327 + $0x18] sm:$0xff]
      %v337 = vld [vmem:[%s327 + $0x20] sm:$0xff]
      %v338 = vld [vmem:[%s327 + $0x28] sm:$0xff]
      %v339 = vld [vmem:[%s327 + $0x30] sm:$0xff]
      %v340 = vld [vmem:[%s327 + $0x38] sm:$0xff]
      %v341 = vld [vmem:[%s1] sm:$0x7]
      %343 = vset.pattern.permute.xlu0 0
      %344 = vperm.xlu0 %343, %v333
      %v345 = vpop.permute.xlu0 %344
      %348 = vset.pattern.permute.xlu0 0
      %349 = vperm.xlu0 %348, %v334
      %v350 = vpop.permute.xlu0 %349
      %353 = vset.pattern.permute.xlu0 0
      %354 = vperm.xlu0 %353, %v335
      %v355 = vpop.permute.xlu0 %354
      %358 = vset.pattern.permute.xlu0 0
      %359 = vperm.xlu0 %358, %v336
      %v360 = vpop.permute.xlu0 %359
      %363 = vset.pattern.permute.xlu0 0
      %364 = vperm.xlu0 %363, %v337
      %v365 = vpop.permute.xlu0 %364
      %368 = vset.pattern.permute.xlu0 0
      %369 = vperm.xlu0 %368, %v338
      %v370 = vpop.permute.xlu0 %369
      %373 = vset.pattern.permute.xlu0 0
      %374 = vperm.xlu0 %373, %v339
      %v375 = vpop.permute.xlu0 %374
      %378 = vset.pattern.permute.xlu0 0
      %379 = vperm.xlu0 %378, %v340
      %v380 = vpop.permute.xlu0 %379
      %v382 = vlaneseq
      %v383 = vshrl.u32 %v382, 7
      %v384 = vsub.s32 0, %v383
      %v385 = vrot.slane %v341, %v384
      %v386 = vmul.f32 %v345, %v385
      %v387 = vmul.f32 %v350, %v385
      %v388 = vmul.f32 %v355, %v385
      %v389 = vmul.f32 %v360, %v385
      %v390 = vmul.f32 %v365, %v385
      %v391 = vmul.f32 %v370, %v385
      %v392 = vmul.f32 %v375, %v385
      %v393 = vmul.f32 %v380, %v385
      %394 = vset.pattern.permute.xlu0 1
      %395 = vperm.xlu0 %394, %v333
      %v396 = vpop.permute.xlu0 %395
      %398 = vset.pattern.permute.xlu0 1
      %399 = vperm.xlu0 %398, %v334
      %v400 = vpop.permute.xlu0 %399
      %402 = vset.pattern.permute.xlu0 1
      %403 = vperm.xlu0 %402, %v335
      %v404 = vpop.permute.xlu0 %403
      %406 = vset.pattern.permute.xlu0 1
      %407 = vperm.xlu0 %406, %v336
      %v408 = vpop.permute.xlu0 %407
      %410 = vset.pattern.permute.xlu0 1
      %411 = vperm.xlu0 %410, %v337
      %v412 = vpop.permute.xlu0 %411
      %414 = vset.pattern.permute.xlu0 1
      %415 = vperm.xlu0 %414, %v338
      %v416 = vpop.permute.xlu0 %415
      %418 = vset.pattern.permute.xlu0 1
      %419 = vperm.xlu0 %418, %v339
      %v420 = vpop.permute.xlu0 %419
      %422 = vset.pattern.permute.xlu0 1
      %423 = vperm.xlu0 %422, %v340
      %v424 = vpop.permute.xlu0 %423
      %v426 = vlaneseq
      %v427 = vshrl.u32 %v426, 7
      %v428 = vsub.s32 1, %v427
      %v429 = vrot.slane %v341, %v428
      %v430 = vmul.f32 %v396, %v429
      %v431 = vmul.f32 %v400, %v429
      %v432 = vmul.f32 %v404, %v429
      %v433 = vmul.f32 %v408, %v429
      %v434 = vmul.f32 %v412, %v429
      %v435 = vmul.f32 %v416, %v429
      %v436 = vmul.f32 %v420, %v429
      %v437 = vmul.f32 %v424, %v429
      %v438 = vadd.f32 %v386, %v430
      %v439 = vadd.f32 %v387, %v431
      %v440 = vadd.f32 %v388, %v432
      %v441 = vadd.f32 %v389, %v433
      %v442 = vadd.f32 %v390, %v434
      %v443 = vadd.f32 %v391, %v435
      %v444 = vadd.f32 %v392, %v436
      %v445 = vadd.f32 %v393, %v437
      %446 = vset.pattern.permute.xlu0 2
      %447 = vperm.xlu0 %446, %v333
      %v448 = vpop.permute.xlu0 %447
      %450 = vset.pattern.permute.xlu0 2
      %451 = vperm.xlu0 %450, %v334
      %v452 = vpop.permute.xlu0 %451
      %454 = vset.pattern.permute.xlu0 2
      %455 = vperm.xlu0 %454, %v335
      %v456 = vpop.permute.xlu0 %455
      %458 = vset.pattern.permute.xlu0 2
      %459 = vperm.xlu0 %458, %v336
      %v460 = vpop.permute.xlu0 %459
      %462 = vset.pattern.permute.xlu0 2
      %463 = vperm.xlu0 %462, %v337
      %v464 = vpop.permute.xlu0 %463
      %466 = vset.pattern.permute.xlu0 2
      %467 = vperm.xlu0 %466, %v338
      %v468 = vpop.permute.xlu0 %467
      %470 = vset.pattern.permute.xlu0 2
      %471 = vperm.xlu0 %470, %v339
      %v472 = vpop.permute.xlu0 %471
      %474 = vset.pattern.permute.xlu0 2
      %475 = vperm.xlu0 %474, %v340
      %v476 = vpop.permute.xlu0 %475
      %v478 = vlaneseq
      %v479 = vshrl.u32 %v478, 7
      %v480 = vsub.s32 2, %v479
      %v481 = vrot.slane %v341, %v480
      %v482 = vmul.f32 %v448, %v481
      %v483 = vmul.f32 %v452, %v481
      %v484 = vmul.f32 %v456, %v481
      %v485 = vmul.f32 %v460, %v481
      %v486 = vmul.f32 %v464, %v481
      %v487 = vmul.f32 %v468, %v481
      %v488 = vmul.f32 %v472, %v481
      %v489 = vmul.f32 %v476, %v481
      %v490 = vadd.f32 %v438, %v482
      %v491 = vadd.f32 %v439, %v483
      %v492 = vadd.f32 %v440, %v484
      %v493 = vadd.f32 %v441, %v485
      %v494 = vadd.f32 %v442, %v486
      %v495 = vadd.f32 %v443, %v487
      %v496 = vadd.f32 %v444, %v488
      %v497 = vadd.f32 %v445, %v489
      %v498 = vld [vmem:[%s2] sm:$0x1]
      %v500 = vlaneseq
      %v501 = vshrl.u32 %v500, 7
      %v502 = vsub.s32 0, %v501
      %v503 = vrot.slane %v498, %v502
      %v505 = vadd.f32 %v490, %v503
      %v506 = vadd.f32 %v491, %v503
      %v507 = vadd.f32 %v492, %v503
      %v508 = vadd.f32 %v493, %v503
      %v509 = vadd.f32 %v494, %v503
      %v510 = vadd.f32 %v495, %v503
      %v511 = vadd.f32 %v496, %v503
      %v512 = vadd.f32 %v497, %v503
      %v513 = vmax.f32 %v505, 0.0
      %v514 = vmax.f32 %v506, 0.0
      %v515 = vmax.f32 %v507, 0.0
      %v516 = vmax.f32 %v508, 0.0
      %v517 = vmax.f32 %v509, 0.0
      %v518 = vmax.f32 %v510, 0.0
      %v519 = vmax.f32 %v511, 0.0
      %v520 = vmax.f32 %v512, 0.0
      %v521 = vld [vmem:[%s3] sm:$0xff]
      %v522 = vld [vmem:[%s3 + $0x8] sm:$0xff]
      %v523 = vld [vmem:[%s3 + $0x10] sm:$0xff]
      %v524 = vld [vmem:[%s3 + $0x18] sm:$0xff]
      %v525 = vld [vmem:[%s4] sm:$0x1]
      %v527 = vlaneseq
      %v528 = vshrl.u32 %v527, 7
      %v529 = vsub.s32 0, %v528
      %v530 = vrot.slane %v525, %v529
      %vm532 = vcmask 261120
      %v534 = vsel %vm532, %v513, 0
      %v537 = vsel %vm532, %v514, 0
      %v540 = vsel %vm532, %v515, 0
      %v543 = vsel %vm532, %v516, 0
      %v546 = vsel %vm532, %v517, 0
      %v549 = vsel %vm532, %v518, 0
      %v552 = vsel %vm532, %v519, 0
      %v555 = vsel %vm532, %v520, 0
      %557 = vmatprep.subr.mxu0 0.0
      %558 = vmatpush1.msra.mxu0 %v521
      %559 = vmatprep.subr.mxu0 0.0
      %560 = vmatpush1.msra.mxu0 %v522
      %561 = vmatprep.subr.mxu0 0.0
      %562 = vmatpush1.msra.mxu0 %v523
      %563 = vmatprep.subr.mxu0 0.0
      %564 = vmatpush1.msra.mxu0 %v524
      %565 = vmatprep.subr.mxu0 0.0
      %566 = vmatpush1.msra.mxu0 0.0
      %567 = vmatprep.subr.mxu0 0.0
      %568 = vmatpush1.msra.mxu0 0.0
      %569 = vmatprep.subr.mxu0 0.0
      %570 = vmatpush1.msra.mxu0 0.0
      %571 = vmatprep.subr.mxu0 0.0
      %572 = vmatpush1.msra.mxu0 0.0
      %573 = vmatprep.subr.mxu0 0.0
      %574 = vmatpush1.msra.mxu0 0.0
      %575 = vmatprep.subr.mxu0 0.0
      %576 = vmatpush1.msra.mxu0 0.0
      %577 = vmatprep.subr.mxu0 0.0
      %578 = vmatpush1.msra.mxu0 0.0
      %579 = vmatprep.subr.mxu0 0.0
      %580 = vmatpush1.msra.mxu0 0.0
      %581 = vmatprep.subr.mxu0 0.0
      %582 = vmatpush1.msra.mxu0 0.0
      %583 = vmatprep.subr.mxu0 0.0
      %584 = vmatpush1.msra.mxu0 0.0
      %585 = vmatprep.subr.mxu0 0.0
      %586 = vmatpush1.msra.mxu0 0.0
      %587 = vmatprep.subr.mxu0 0.0
      %588 = vmatpush1.msra.mxu0 0.0
      %589 = vmatprep.subr.mxu0 0.0
      %590 = vmatpush1.msra.mxu0 0.0
      %591 = vmatprep.subr.mxu0 0.0
      %592 = vmatpush1.msra.mxu0 0.0
      %593 = vmatprep.subr.mxu0 0.0
      %594 = vmatpush1.msra.mxu0 0.0
      %595 = vmatprep.subr.mxu0 0.0
      %596 = vmatpush1.msra.mxu0 0.0
      %597 = vmatprep.subr.mxu0 0.0
      %598 = vmatpush1.msra.mxu0 0.0
      %599 = vmatprep.subr.mxu0 0.0
      %600 = vmatpush1.msra.mxu0 0.0
      %601 = vmatprep.subr.mxu0 0.0
      %602 = vmatpush1.msra.mxu0 0.0
      %603 = vmatprep.subr.mxu0 0.0
      %604 = vmatpush1.msra.mxu0 0.0
      %605 = vmatprep.subr.mxu0 0.0
      %606 = vmatpush1.msra.mxu0 0.0
      %607 = vmatprep.subr.mxu0 0.0
      %608 = vmatpush1.msra.mxu0 0.0
      %609 = vmatprep.subr.mxu0 0.0
      %610 = vmatpush1.msra.mxu0 0.0
      %611 = vmatprep.subr.mxu0 0.0
      %612 = vmatpush1.msra.mxu0 0.0
      %613 = vmatprep.subr.mxu0 0.0
      %614 = vmatpush1.msra.mxu0 0.0
      %615 = vmatprep.subr.mxu0 0.0
      %616 = vmatpush1.msra.mxu0 0.0
      %617 = vmatprep.subr.mxu0 0.0
      %618 = vmatpush1.msra.mxu0 0.0
      %619 = vmatprep.subr.mxu0 0.0
      %620 = vmatpush1.msra.mxu0 0.0
      %621 = vmatprep.mubr.f32.mxu0 0.0
      %622 = vmatmul.mubr.f32.gmra.mrb[0].mxu0 %v534
      %v623 = vpop.f32.mrb[0].mxu0
      %v624 = vadd.f32 %v530, %v623
      %v625 = vpop.f32.mrb[0].mxu0
      %626 = vmatprep.mubr.f32.mxu0 0.0
      %627 = vmatmul.mubr.f32.gmra.mrb[0].mxu0 %v537
      %v628 = vpop.f32.mrb[0].mxu0
      %v629 = vadd.f32 %v530, %v628
      %v630 = vpop.f32.mrb[0].mxu0
      %631 = vmatprep.mubr.f32.mxu0 0.0
      %632 = vmatmul.mubr.f32.gmra.mrb[0].mxu0 %v540
      %v633 = vpop.f32.mrb[0].mxu0
      %v634 = vadd.f32 %v530, %v633
      %v635 = vpop.f32.mrb[0].mxu0
      %636 = vmatprep.mubr.f32.mxu0 0.0
      %637 = vmatmul.mubr.f32.gmra.mrb[0].mxu0 %v543
      %v638 = vpop.f32.mrb[0].mxu0
      %v639 = vadd.f32 %v530, %v638
      %v640 = vpop.f32.mrb[0].mxu0
      %641 = vmatprep.mubr.f32.mxu0 0.0
      %642 = vmatmul.mubr.f32.gmra.mrb[0].mxu0 %v546
      %v643 = vpop.f32.mrb[0].mxu0
      %v644 = vadd.f32 %v530, %v643
      %v645 = vpop.f32.mrb[0].mxu0
      %646 = vmatprep.mubr.f32.mxu0 0.0
      %647 = vmatmul.mubr.f32.gmra.mrb[0].mxu0 %v549
      %v648 = vpop.f32.mrb[0].mxu0
      %v649 = vadd.f32 %v530, %v648
      %v650 = vpop.f32.mrb[0].mxu0
      %651 = vmatprep.mubr.f32.mxu0 0.0
      %652 = vmatmul.mubr.f32.gmra.mrb[0].mxu0 %v552
      %v653 = vpop.f32.mrb[0].mxu0
      %v654 = vadd.f32 %v530, %v653
      %v655 = vpop.f32.mrb[0].mxu0
      %656 = vmatprep.mubr.f32.mxu0 0.0
      %657 = vmatmul.mubr.f32.gmra.mrb[0].mxu0 %v555
      %v658 = vpop.f32.mrb[0].mxu0
      %v659 = vadd.f32 %v530, %v658
      %v660 = vpop.f32.mrb[0].mxu0
      %661 = vdwg.mxu0
      %vm662 = vcmp.gt.f32.partialorder %v333, 0.0
      %vm663 = vcmp.gt.f32.partialorder %v334, 0.0
      %vm664 = vcmp.gt.f32.partialorder %v335, 0.0
      %vm665 = vcmp.gt.f32.partialorder %v336, 0.0
      %vm666 = vcmp.gt.f32.partialorder %v337, 0.0
      %vm667 = vcmp.gt.f32.partialorder %v338, 0.0
      %vm668 = vcmp.gt.f32.partialorder %v339, 0.0
      %vm669 = vcmp.gt.f32.partialorder %v340, 0.0
      %v670 = vsel %vm662, 1, 0
      %v671 = vsel %vm663, 1, 0
      %v672 = vsel %vm664, 1, 0
      %v673 = vsel %vm665, 1, 0
      %v674 = vsel %vm666, 1, 0
      %v675 = vsel %vm667, 1, 0
      %v676 = vsel %vm668, 1, 0
      %v677 = vsel %vm669, 1, 0
      %678 = vset.pattern.permute.xlu0 3
      %679 = vperm.xlu0 %678, %v670
      %v680 = vpop.permute.xlu0 %679
      %681 = vset.pattern.permute.xlu0 3
      %682 = vperm.xlu0 %681, %v671
      %v683 = vpop.permute.xlu0 %682
      %684 = vset.pattern.permute.xlu0 3
      %685 = vperm.xlu0 %684, %v672
      %v686 = vpop.permute.xlu0 %685
      %687 = vset.pattern.permute.xlu0 3
      %688 = vperm.xlu0 %687, %v673
      %v689 = vpop.permute.xlu0 %688
      %690 = vset.pattern.permute.xlu0 3
      %691 = vperm.xlu0 %690, %v674
      %v692 = vpop.permute.xlu0 %691
      %693 = vset.pattern.permute.xlu0 3
      %694 = vperm.xlu0 %693, %v675
      %v695 = vpop.permute.xlu0 %694
      %696 = vset.pattern.permute.xlu0 3
      %697 = vperm.xlu0 %696, %v676
      %v698 = vpop.permute.xlu0 %697
      %699 = vset.pattern.permute.xlu0 3
      %700 = vperm.xlu0 %699, %v677
      %v701 = vpop.permute.xlu0 %700
      %vm702 = vcmp.eq.s32.totalorder %v680, 1
      %vm703 = vcmp.eq.s32.totalorder %v683, 1
      %vm704 = vcmp.eq.s32.totalorder %v686, 1
      %vm705 = vcmp.eq.s32.totalorder %v689, 1
      %vm706 = vcmp.eq.s32.totalorder %v692, 1
      %vm707 = vcmp.eq.s32.totalorder %v695, 1
      %vm708 = vcmp.eq.s32.totalorder %v698, 1
      %vm709 = vcmp.eq.s32.totalorder %v701, 1
      %v710 = vsel %vm702, %v624, -3e+38
      %v711 = vsel %vm703, %v629, -3e+38
      %v712 = vsel %vm704, %v634, -3e+38
      %v713 = vsel %vm705, %v639, -3e+38
      %v714 = vsel %vm706, %v644, -3e+38
      %v715 = vsel %vm707, %v649, -3e+38
      %v716 = vsel %vm708, %v654, -3e+38
      %v717 = vsel %vm709, %v659, -3e+38
      %v718 = vsel %vm532, %v710, -inf
      %v719 = vrot.slane %v718, 4
      %v720 = vmax.f32 %v718, %v719
      %v721 = vrot.slane %v720, 2
      %v722 = vmax.f32 %v720, %v721
      %v723 = vrot.slane %v722, 1
      %v724 = vmax.f32 %v722, %v723
      %v725 = vsel %vm532, %v711, -inf
      %v726 = vrot.slane %v725, 4
      %v727 = vmax.f32 %v725, %v726
      %v728 = vrot.slane %v727, 2
      %v729 = vmax.f32 %v727, %v728
      %v730 = vrot.slane %v729, 1
      %v731 = vmax.f32 %v729, %v730
      %v732 = vsel %vm532, %v712, -inf
      %v733 = vrot.slane %v732, 4
      %v734 = vmax.f32 %v732, %v733
      %v735 = vrot.slane %v734, 2
      %v736 = vmax.f32 %v734, %v735
      %v737 = vrot.slane %v736, 1
      %v738 = vmax.f32 %v736, %v737
      %v739 = vsel %vm532, %v713, -inf
      %v740 = vrot.slane %v739, 4
      %v741 = vmax.f32 %v739, %v740
      %v742 = vrot.slane %v741, 2
      %v743 = vmax.f32 %v741, %v742
      %v744 = vrot.slane %v743, 1
      %v745 = vmax.f32 %v743, %v744
      %v746 = vsel %vm532, %v714, -inf
      %v747 = vrot.slane %v746, 4
      %v748 = vmax.f32 %v746, %v747
      %v749 = vrot.slane %v748, 2
      %v750 = vmax.f32 %v748, %v749
      %v751 = vrot.slane %v750, 1
      %v752 = vmax.f32 %v750, %v751
      %v753 = vsel %vm532, %v715, -inf
      %v754 = vrot.slane %v753, 4
      %v755 = vmax.f32 %v753, %v754
      %v756 = vrot.slane %v755, 2
      %v757 = vmax.f32 %v755, %v756
      %v758 = vrot.slane %v757, 1
      %v759 = vmax.f32 %v757, %v758
      %v760 = vsel %vm532, %v716, -inf
      %v761 = vrot.slane %v760, 4
      %v762 = vmax.f32 %v760, %v761
      %v763 = vrot.slane %v762, 2
      %v764 = vmax.f32 %v762, %v763
      %v765 = vrot.slane %v764, 1
      %v766 = vmax.f32 %v764, %v765
      %v767 = vsel %vm532, %v717, -inf
      %v768 = vrot.slane %v767, 4
      %v769 = vmax.f32 %v767, %v768
      %v770 = vrot.slane %v769, 2
      %v771 = vmax.f32 %v769, %v770
      %v772 = vrot.slane %v771, 1
      %v773 = vmax.f32 %v771, %v772
      %vm774 = vcmp.le.f32.partialorder %v724, -1.5e+38
      %vm775 = vcmp.le.f32.partialorder %v731, -1.5e+38
      %vm776 = vcmp.le.f32.partialorder %v738, -1.5e+38
      %vm777 = vcmp.le.f32.partialorder %v745, -1.5e+38
      %vm778 = vcmp.le.f32.partialorder %v752, -1.5e+38
      %vm779 = vcmp.le.f32.partialorder %v759, -1.5e+38
      %vm780 = vcmp.le.f32.partialorder %v766, -1.5e+38
      %vm781 = vcmp.le.f32.partialorder %v773, -1.5e+38
      %v782 = vsel %vm774, 0.0, %v724
      %v783 = vsel %vm775, 0.0, %v731
      %v784 = vsel %vm776, 0.0, %v738
      %v785 = vsel %vm777, 0.0, %v745
      %v786 = vsel %vm778, 0.0, %v752
      %v787 = vsel %vm779, 0.0, %v759
      %v788 = vsel %vm780, 0.0, %v766
      %v789 = vsel %vm781, 0.0, %v773
      %v790 = vld [vmem:[%s5] sm:$0xff]
      %v791 = vld [vmem:[%s5 + $0x8] sm:$0xff]
      %v792 = vld [vmem:[%s5 + $0x10] sm:$0xff]
      %v793 = vld [vmem:[%s5 + $0x18] sm:$0xff]
      %v794 = vld [vmem:[%s6] sm:$0x1]
      %v796 = vlaneseq
      %v797 = vshrl.u32 %v796, 7
      %v798 = vsub.s32 0, %v797
      %v799 = vrot.slane %v794, %v798
      %vm809 = vcmask 1041409
      %v810 = vsel %vm809, %v783, %v782
      %vm811 = vcmask 1042434
      %v812 = vsel %vm811, %v784, %v810
      %vm813 = vcmask 1043459
      %v814 = vsel %vm813, %v785, %v812
      %vm815 = vcmask 1044484
      %v816 = vsel %vm815, %v786, %v814
      %vm817 = vcmask 1045509
      %v818 = vsel %vm817, %v787, %v816
      %vm819 = vcmask 1046534
      %v820 = vsel %vm819, %v788, %v818
      %vm821 = vcmask 1047559
      %v822 = vsel %vm821, %v789, %v820
      %v823 = vsel %vm532, %v822, 0
      %825 = vmatprep.subr.mxu0 0.0
      %826 = vmatpush1.msra.mxu0 %v790
      %827 = vmatprep.subr.mxu0 0.0
      %828 = vmatpush1.msra.mxu0 %v791
      %829 = vmatprep.subr.mxu0 0.0
      %830 = vmatpush1.msra.mxu0 %v792
      %831 = vmatprep.subr.mxu0 0.0
      %832 = vmatpush1.msra.mxu0 %v793
      %833 = vmatprep.subr.mxu0 0.0
      %834 = vmatpush1.msra.mxu0 0.0
      %835 = vmatprep.subr.mxu0 0.0
      %836 = vmatpush1.msra.mxu0 0.0
      %837 = vmatprep.subr.mxu0 0.0
      %838 = vmatpush1.msra.mxu0 0.0
      %839 = vmatprep.subr.mxu0 0.0
      %840 = vmatpush1.msra.mxu0 0.0
      %841 = vmatprep.subr.mxu0 0.0
      %842 = vmatpush1.msra.mxu0 0.0
      %843 = vmatprep.subr.mxu0 0.0
      %844 = vmatpush1.msra.mxu0 0.0
      %845 = vmatprep.subr.mxu0 0.0
      %846 = vmatpush1.msra.mxu0 0.0
      %847 = vmatprep.subr.mxu0 0.0
      %848 = vmatpush1.msra.mxu0 0.0
      %849 = vmatprep.subr.mxu0 0.0
      %850 = vmatpush1.msra.mxu0 0.0
      %851 = vmatprep.subr.mxu0 0.0
      %852 = vmatpush1.msra.mxu0 0.0
      %853 = vmatprep.subr.mxu0 0.0
      %854 = vmatpush1.msra.mxu0 0.0
      %855 = vmatprep.subr.mxu0 0.0
      %856 = vmatpush1.msra.mxu0 0.0
      %857 = vmatprep.subr.mxu0 0.0
      %858 = vmatpush1.msra.mxu0 0.0
      %859 = vmatprep.subr.mxu0 0.0
      %860 = vmatpush1.msra.mxu0 0.0
      %861 = vmatprep.subr.mxu0 0.0
      %862 = vmatpush1.msra.mxu0 0.0
      %863 = vmatprep.subr.mxu0 0.0
      %864 = vmatpush1.msra.mxu0 0.0
      %865 = vmatprep.subr.mxu0 0.0
      %866 = vmatpush1.msra.mxu0 0.0
      %867 = vmatprep.subr.mxu0 0.0
      %868 = vmatpush1.msra.mxu0 0.0
      %869 = vmatprep.subr.mxu0 0.0
      %870 = vmatpush1.msra.mxu0 0.0
      %871 = vmatprep.subr.mxu0 0.0
      %872 = vmatpush1.msra.mxu0 0.0
      %873 = vmatprep.subr.mxu0 0.0
      %874 = vmatpush1.msra.mxu0 0.0
      %875 = vmatprep.subr.mxu0 0.0
      %876 = vmatpush1.msra.mxu0 0.0
      %877 = vmatprep.subr.mxu0 0.0
      %878 = vmatpush1.msra.mxu0 0.0
      %879 = vmatprep.subr.mxu0 0.0
      %880 = vmatpush1.msra.mxu0 0.0
      %881 = vmatprep.subr.mxu0 0.0
      %882 = vmatpush1.msra.mxu0 0.0
      %883 = vmatprep.subr.mxu0 0.0
      %884 = vmatpush1.msra.mxu0 0.0
      %885 = vmatprep.subr.mxu0 0.0
      %886 = vmatpush1.msra.mxu0 0.0
      %887 = vmatprep.subr.mxu0 0.0
      %888 = vmatpush1.msra.mxu0 0.0
      %889 = vmatprep.mubr.f32.mxu0 0.0
      %890 = vmatmul.mubr.f32.gmra.mrb[0].mxu0 %v823
      %v891 = vpop.f32.mrb[0].mxu0
      %v892 = vadd.f32 %v799, %v891
      %v893 = vpop.f32.mrb[0].mxu0
      %894 = vdwg.mxu0
      %v895 = vmax.f32 %v892, 0.0
      %v896 = vld [vmem:[%s7] sm:$0xff]
      %v897 = vld [vmem:[%s7 + $0x8] sm:$0xff]
      %v898 = vld [vmem:[%s7 + $0x10] sm:$0xff]
      %v899 = vld [vmem:[%s7 + $0x18] sm:$0xff]
      %v900 = vld [vmem:[%s8] sm:$0x1]
      %v902 = vlaneseq
      %v903 = vshrl.u32 %v902, 7
      %v904 = vsub.s32 0, %v903
      %v905 = vrot.slane %v900, %v904
      %v908 = vsel %vm532, %v895, 0
      %910 = vmatprep.subr.mxu0 0.0
      %911 = vmatpush1.msra.mxu0 %v896
      %912 = vmatprep.subr.mxu0 0.0
      %913 = vmatpush1.msra.mxu0 %v897
      %914 = vmatprep.subr.mxu0 0.0
      %915 = vmatpush1.msra.mxu0 %v898
      %916 = vmatprep.subr.mxu0 0.0
      %917 = vmatpush1.msra.mxu0 %v899
      %918 = vmatprep.subr.mxu0 0.0
      %919 = vmatpush1.msra.mxu0 0.0
      %920 = vmatprep.subr.mxu0 0.0
      %921 = vmatpush1.msra.mxu0 0.0
      %922 = vmatprep.subr.mxu0 0.0
      %923 = vmatpush1.msra.mxu0 0.0
      %924 = vmatprep.subr.mxu0 0.0
      %925 = vmatpush1.msra.mxu0 0.0
      %926 = vmatprep.subr.mxu0 0.0
      %927 = vmatpush1.msra.mxu0 0.0
      %928 = vmatprep.subr.mxu0 0.0
      %929 = vmatpush1.msra.mxu0 0.0
      %930 = vmatprep.subr.mxu0 0.0
      %931 = vmatpush1.msra.mxu0 0.0
      %932 = vmatprep.subr.mxu0 0.0
      %933 = vmatpush1.msra.mxu0 0.0
      %934 = vmatprep.subr.mxu0 0.0
      %935 = vmatpush1.msra.mxu0 0.0
      %936 = vmatprep.subr.mxu0 0.0
      %937 = vmatpush1.msra.mxu0 0.0
      %938 = vmatprep.subr.mxu0 0.0
      %939 = vmatpush1.msra.mxu0 0.0
      %940 = vmatprep.subr.mxu0 0.0
      %941 = vmatpush1.msra.mxu0 0.0
      %942 = vmatprep.subr.mxu0 0.0
      %943 = vmatpush1.msra.mxu0 0.0
      %944 = vmatprep.subr.mxu0 0.0
      %945 = vmatpush1.msra.mxu0 0.0
      %946 = vmatprep.subr.mxu0 0.0
      %947 = vmatpush1.msra.mxu0 0.0
      %948 = vmatprep.subr.mxu0 0.0
      %949 = vmatpush1.msra.mxu0 0.0
      %950 = vmatprep.subr.mxu0 0.0
      %951 = vmatpush1.msra.mxu0 0.0
      %952 = vmatprep.subr.mxu0 0.0
      %953 = vmatpush1.msra.mxu0 0.0
      %954 = vmatprep.subr.mxu0 0.0
      %955 = vmatpush1.msra.mxu0 0.0
      %956 = vmatprep.subr.mxu0 0.0
      %957 = vmatpush1.msra.mxu0 0.0
      %958 = vmatprep.subr.mxu0 0.0
      %959 = vmatpush1.msra.mxu0 0.0
      %960 = vmatprep.subr.mxu0 0.0
      %961 = vmatpush1.msra.mxu0 0.0
      %962 = vmatprep.subr.mxu0 0.0
      %963 = vmatpush1.msra.mxu0 0.0
      %964 = vmatprep.subr.mxu0 0.0
      %965 = vmatpush1.msra.mxu0 0.0
      %966 = vmatprep.subr.mxu0 0.0
      %967 = vmatpush1.msra.mxu0 0.0
      %968 = vmatprep.subr.mxu0 0.0
      %969 = vmatpush1.msra.mxu0 0.0
      %970 = vmatprep.subr.mxu0 0.0
      %971 = vmatpush1.msra.mxu0 0.0
      %972 = vmatprep.subr.mxu0 0.0
      %973 = vmatpush1.msra.mxu0 0.0
      %974 = vmatprep.mubr.f32.mxu0 0.0
      %975 = vmatmul.mubr.f32.gmra.mrb[0].mxu0 %v908
      %v976 = vpop.f32.mrb[0].mxu0
      %v977 = vadd.f32 %v905, %v976
      %v978 = vpop.f32.mrb[0].mxu0
      %979 = vdwg.mxu0
      %vm980 = vcmask 130048
      %981 = vst.msk [vmem:[%s332] sm:$0xff] %vm980, %v977
      %p982 = scmp.lt.s32.totalorder %s20, 1
      %s983 = scalar_select %p982, %s20, 1
      %s984 = smul.addr %s983, 8
      %s985 = scalar_lea.vmem %s9, %s984
      // Predicated region
      $region57: #{_core.1} parent=55 // pred_check
        %p986 = pneg %p232
      $region58: #{_core.1} parent=55 // pred_check_branch
        %988 = sbr.rel (%p986) target = $region60
      $region59: #{_core.1} parent=55 // pred_region
        _
      $region60: #{_core.1} parent=55 // pred_fallthru
        _
    $region56: #{_core.1} parent=5 // pred_fallthru
      _
    %p989 = scmp.le.s32.totalorder 2, %s15
    // Predicated region
    $region61: #{_core.1} parent=5 // pred_check
      %p990 = pneg %p989
    $region62: #{_core.1} parent=5 // pred_check_branch
      %992 = sbr.rel (%p990) target = $region64
    $region63: #{_core.1} parent=5 // pred_region
      %s993 = ssub.s32 %s15, 2
      // Predicated region
      $region65: #{_core.1} parent=63 // pred_check
        %p994 = pneg %p238
      $region66: #{_core.1} parent=63 // pred_check_branch
        %996 = sbr.rel (%p994) target = $region68
      $region67: #{_core.1} parent=63 // pred_region
        %p997 = scmp.lt.s32.totalorder %s21, 1
        %s998 = scalar_select %p997, %s21, 1
        %s999 = smul.addr %s998, 8
        %s1000 = scalar_lea.vmem %s9, %s999
      $region68: #{_core.1} parent=63 // pred_fallthru
        _
    $region64: #{_core.1} parent=5 // pred_fallthru
      _
  $region6: #{_core.1} parent=0 // loop_footer
    %s19 = sadd.s32 1, %s15
  $region7: #{_core.1} parent=0 // loop_footer_branch
    %14 = sbr.rel target = $region3
  $region8: #{_core.1} parent=0 // loop_exit
    _

</llo_original>
